<compile_context>
chip_gen: v6e
topology: v6e:2x2x1
jax: 0.10.0
libtpu: 0.0.40
codegen_flags: <defaults>
</compile_context>

<pallas_src>
import numpy as np
import jax
import jax.numpy as jnp
from jax.experimental import pallas as pl
from jax.experimental.pallas import tpu as pltpu

# ---- module "parameters" (from __init__ defaults) ---------------------------
COST_CLASS = 1.0
COST_BBOX = 1.0
COST_GIOU = 1.0


def _round_up(x, m):
    return (x + m - 1) // m * m


def _make_cost_kernel(w_bbox, w_giou):
    # w_bbox / w_giou are Python floats -> inline literals, not captured arrays.
    def kernel(logits_ref, boxes_ref, gather_ref, tgt_ref, c_ref):
        # ---- class cost: -w_class * softmax(logits)[:, tgt_ids] (fused) -----
        logits = logits_ref[...]
        e = jnp.exp(logits - jnp.max(logits, axis=-1, keepdims=True))
        inv_den = pl.reciprocal(jnp.sum(e, axis=-1, keepdims=True), approx=True)
        probs = (e * inv_den).astype(jnp.bfloat16)
        # gather_ref holds (-w_class) * one_hot(tgt_ids).T in bf16 (exact values),
        # zero-padded, so one bf16 MXU matmul is the weighted class cost.
        acc = jnp.dot(probs, gather_ref[...], preferred_element_type=jnp.float32)

        # ---- predicted-box prep, computed once ((TM,1) columns) -------------
        b = boxes_ref[...]
        cx, cy = b[:, 0:1], b[:, 1:2]
        w, h = b[:, 2:3], b[:, 3:4]
        px0, py0 = cx - 0.5 * w, cy - 0.5 * h
        px1, py1 = cx + 0.5 * w, cy + 0.5 * h
        area_p = w * h

        # ---- target pack (host precomputed), (1,TN) rows ----------------------
        tcx, tcy = tgt_ref[0:1, :], tgt_ref[1:2, :]
        tw, th = tgt_ref[2:3, :], tgt_ref[3:4, :]
        tx0, ty0 = tgt_ref[4:5, :], tgt_ref[5:6, :]
        tx1, ty1 = tgt_ref[6:7, :], tgt_ref[7:8, :]
        area_t = tw * th  # (1, TN) only — cheap, saves a sublane tile of DMA

        # ---- L1 cdist, accumulated directly (few live (TM,TN) temporaries) ---
        acc = acc + w_bbox * (jnp.abs(cx - tcx) + jnp.abs(cy - tcy)
                              + jnp.abs(w - tw) + jnp.abs(h - th))

        # ---- GIoU: single fused EUP reciprocal per tile -----------------------
        inter = (jnp.maximum(jnp.minimum(px1, tx1) - jnp.maximum(px0, tx0), 0.0)
                 * jnp.maximum(jnp.minimum(py1, ty1) - jnp.maximum(py0, ty0), 0.0))
        union = area_p + area_t - inter
        area_c = (jnp.maximum(jnp.maximum(px1, tx1) - jnp.minimum(px0, tx0), 0.0)
                  * jnp.maximum(jnp.maximum(py1, ty1) - jnp.minimum(py0, ty0), 0.0))
        # giou = inter/union - (area_c - union)/area_c
        num = inter * area_c - (area_c - union) * union
        denom = jnp.maximum(union * area_c, 1e-12)   # guard degenerate boxes
        c_ref[...] = acc - w_giou * num * pl.reciprocal(denom, approx=True)

    return kernel


def hungarian_cost(pred_logits, pred_boxes, tgt_ids, tgt_boxes,
                   cost_class=COST_CLASS, cost_bbox=COST_BBOX,
                   cost_giou=COST_GIOU, block_rows=512):
    """Pair-wise matching cost C, shape (N, T) with N = bs*num_queries."""
    N, C = pred_logits.shape
    T = int(tgt_ids.shape[0])

    logits = jnp.asarray(pred_logits, jnp.float32)
    boxes = jnp.asarray(pred_boxes, jnp.float32)
    sentinel = jnp.array([[0.5, 0.5, 1.0, 1.0]], jnp.float32)  # unit box, no 0-area

    # ---- optional class-dim padding (lane-dense logits / K=128 MXU contraction)
    # Must pad with a large NEGATIVE value so the softmax denominator is unchanged.
    if C % 128 != 0 and C >= 64:
        C_pad = _round_up(C, 128)
        logits = jnp.pad(logits, ((0, 0), (0, C_pad - C)), constant_values=-1e30)
    else:
        C_pad = C

    # ---- row tiling: big tiles, but >=2 parallel steps for v7x's 2 TCs ---------
    N8 = _round_up(max(N, 1), 8)
    TM = min(block_rows, N8)
    if N8 // TM < 2 and N8 >= 16:
        TM = _round_up((N8 + 1) // 2, 8)

    # ---- column tiling with a VMEM budget guard (v7x has the smallest VMEM) ----
    T_pad0 = _round_up(max(T, 1), 128)          # lane-dense output columns
    TN = min(T_pad0, 2048)

    def vmem_est(tm, tn):
        # double-buffered operands + rough in-kernel f32 temporaries
        resident = 2 * (tm * C_pad * 4 + tm * 16 + C_pad * tn * 2
                        + 8 * tn * 4 + tm * tn * 4)
        live = 6 * tm * tn * 4 + 2 * tm * C_pad * 4
        return resident + live

    budget = 24 << 20                            # conservative vs 32 MiB scoped default
    while vmem_est(TM, TN) > budget and TN > 128:
        TN //= 2
    while vmem_est(TM, TN) > budget and TM > 64:
        TM = _round_up(max(TM // 2, 64), 8)

    N_pad = _round_up(N8, TM)
    T_pad = _round_up(T_pad0, TN)

    # ---- pad predictions -------------------------------------------------------
    if N_pad > N:
        pad_logits = jnp.full((N_pad - N, C_pad), -1e30, jnp.float32)
        pad_logits = pad_logits.at[:, 0].set(0.0)   # keep a valid softmax row
        logits = jnp.concatenate([logits, pad_logits], axis=0)
        boxes = jnp.concatenate([boxes, jnp.tile(sentinel, (N_pad - N, 1))], axis=0)

    # fused, pre-weighted one-hot gather (C_pad, T_pad) in bf16 (values exact);
    # padded class rows / target columns are zero.
    gather = (-float(cost_class)) * jax.nn.one_hot(tgt_ids, C_pad, dtype=jnp.float32).T
    gather = jnp.pad(gather, ((0, 0), (0, T_pad - T))).astype(jnp.bfloat16)

    # target pack (8, T_pad): rows 0-3 cxcywh, 4-7 xyxy — one f32 sublane tile.
    tb = jnp.asarray(tgt_boxes, jnp.float32)
    tb = jnp.concatenate([tb, jnp.tile(sentinel, (T_pad - T, 1))], axis=0)
    x0y0 = tb[:, :2] - 0.5 * tb[:, 2:]
    x1y1 = tb[:, :2] + 0.5 * tb[:, 2:]
    tgt_pack = jnp.concatenate([tb, x0y0, x1y1], axis=1).T   # (8, T_pad)

    kernel = _make_cost_kernel(float(cost_bbox), float(cost_giou))

    cost_est = pl.CostEstimate(
        flops=int(2 * N_pad * C_pad * T_pad + 40 * N_pad * T_pad),
        transcendentals=int(N_pad * C_pad + N_pad + N_pad * T_pad),
        bytes_accessed=int(N_pad * C_pad * 4 + N_pad * 16 + C_pad * T_pad * 2
                           + 8 * T_pad * 4 + N_pad * T_pad * 4),
    )

    c_full = pl.pallas_call(
        kernel,
        out_shape=jax.ShapeDtypeStruct((N_pad, T_pad), jnp.float32),
        grid=(N_pad // TM, T_pad // TN),
        in_specs=[pl.BlockSpec((TM, C_pad), lambda i, j: (i, 0)),
                  pl.BlockSpec((TM, 4), lambda i, j: (i, 0)),
                  pl.BlockSpec((C_pad, TN), lambda i, j: (0, j)),
                  pl.BlockSpec((8, TN), lambda i, j: (0, j))],
        out_specs=pl.BlockSpec((TM, TN), lambda i, j: (i, j)),
        compiler_params=pltpu.CompilerParams(
            dimension_semantics=("parallel", "parallel")),
        cost_estimate=cost_est,
    )(logits, boxes, gather, tgt_pack)
    return c_full[:N, :T]


# -------------------------- numpy reference ----------------------------------
def _ref_cost(pred_logits, pred_boxes, tgt_ids, tgt_boxes,
              cost_class=COST_CLASS, cost_bbox=COST_BBOX, cost_giou=COST_GIOU):
    logits = np.asarray(pred_logits, np.float64)
    boxes = np.asarray(pred_boxes, np.float64)
    tgt_ids = np.asarray(tgt_ids)
    tgt_boxes = np.asarray(tgt_boxes, np.float64)

    e = np.exp(logits - logits.max(-1, keepdims=True))
    prob = e / e.sum(-1, keepdims=True)
    c_class = -prob[:, tgt_ids]

    c_bbox = np.abs(boxes[:, None, :] - tgt_boxes[None, :, :]).sum(-1)

    def xyxy(b):
        cx, cy, w, h = b[:, 0], b[:, 1], b[:, 2], b[:, 3]
        return np.stack([cx - .5 * w, cy - .5 * h, cx + .5 * w, cy + .5 * h], -1)

    b1, b2 = xyxy(boxes), xyxy(tgt_boxes)
    a1 = (b1[:, 2] - b1[:, 0]) * (b1[:, 3] - b1[:, 1])
    a2 = (b2[:, 2] - b2[:, 0]) * (b2[:, 3] - b2[:, 1])
    lt = np.maximum(b1[:, None, :2], b2[None, :, :2])
    rb = np.minimum(b1[:, None, 2:], b2[None, :, 2:])
    wh = np.clip(rb - lt, 0, None)
    inter = wh[..., 0] * wh[..., 1]
    union = a1[:, None] + a2[None, :] - inter
    iou = inter / union
    ltc = np.minimum(b1[:, None, :2], b2[None, :, :2])
    rbc = np.maximum(b1[:, None, 2:], b2[None, :, 2:])
    whc = np.clip(rbc - ltc, 0, None)
    areac = whc[..., 0] * whc[..., 1]
    giou = iou - (areac - union) / areac
    return cost_bbox * c_bbox + cost_class * c_class + cost_giou * (-giou)


if __name__ == "__main__":
    bs, num_queries, num_classes = 2, 32, 16
    key = jax.random.PRNGKey(0)
    ks = jax.random.split(key, 4)

    def rand_cxcywh(k, shape):
        k1, k2 = jax.random.split(k)
        cxy = jax.random.uniform(k1, shape[:-1] + (2,), minval=0.2, maxval=0.8)
        wh = jax.random.uniform(k2, shape[:-1] + (2,), minval=0.05, maxval=0.3)
        return jnp.concatenate([cxy, wh], axis=-1).astype(jnp.float32)

    pred_logits = jax.random.normal(ks[0], (bs, num_queries, num_classes), jnp.float32)
    pred_boxes = rand_cxcywh(ks[1], (bs, num_queries, 4))

    targets = [
        {"labels": jnp.array([3, 7], jnp.int32),
         "boxes": rand_cxcywh(ks[2], (2, 4))},
        {"labels": jnp.array([1, 9, 14], jnp.int32),
         "boxes": rand_cxcywh(ks[3], (3, 4))},
    ]

    tgt_ids = jnp.concatenate([t["labels"] for t in targets])
    tgt_boxes = jnp.concatenate([t["boxes"] for t in targets])

    N = bs * num_queries
    logits_f = pred_logits.reshape(N, num_classes)
    boxes_f = pred_boxes.reshape(N, 4)

    C = hungarian_cost(logits_f, boxes_f, tgt_ids, tgt_boxes)
    C = jax.block_until_ready(C)

    # correctness check against a pure-numpy reference of the torch math
    C_ref = _ref_cost(logits_f, boxes_f, tgt_ids, tgt_boxes)
    np.testing.assert_allclose(np.asarray(C), C_ref, rtol=2e-2, atol=2e-2)

    # ---- host-side Hungarian assignment (the torch module's .cpu() step) -----
    # TODO(synk): linear_sum_assignment has no Pallas equivalent; it runs on host.
    def _lsa(cost):
        try:
            from scipy.optimize import linear_sum_assignment
            return linear_sum_assignment(cost)
        except Exception:
            import itertools
            nq, nt = cost.shape
            best_s, best_rows = None, None
            for rows in itertools.permutations(range(nq), nt):
                s = float(cost[list(rows), list(range(nt))].sum())
                if best_s is None or s < best_s:
                    best_s, best_rows = s, rows
            rows = np.asarray(best_rows)
            cols = np.arange(nt)
            order = np.argsort(rows)
            return rows[order], cols[order]

    T_total = int(tgt_ids.shape[0])
    C_host = np.asarray(C, np.float64).reshape(bs, num_queries, T_total)
    sizes = [int(t["boxes"].shape[0]) for t in targets]
    splits = np.split(C_host, np.cumsum(sizes)[:-1], axis=-1)
    indices = [_lsa(c[i]) for i, c in enumerate(splits)]
    indices = [(np.asarray(i, np.int64), np.asarray(j, np.int64)) for i, j in indices]
    assert all(len(i) == min(num_queries, s) for (i, _), s in zip(indices, sizes))

    print("KERNEL_OK")
</pallas_src>

<mosaic_0001>
module attributes {stable_mosaic.version = 11 : i64} {
  func.func @kernel(%arg0: i32, %arg1: i32, %arg2: memref<32x16xf32, #tpu.memory_space<vmem>>, %arg3: memref<32x4xf32, #tpu.memory_space<vmem>>, %arg4: memref<16x128xbf16, #tpu.memory_space<vmem>>, %arg5: memref<8x128xf32, #tpu.memory_space<vmem>>, %arg6: memref<32x128xf32, #tpu.memory_space<vmem>>) attributes {dimension_semantics = [#tpu.dimension_semantics<parallel>, #tpu.dimension_semantics<parallel>], iteration_bounds = array<i64: 2, 1>, scalar_prefetch = 0 : i64, scratch_operands = 0 : i64, tpu.core_type = #tpu.core_type<tc>, window_params = [{transform_indices = @transform_0, window_bounds = array<i64: 32, 16>}, {transform_indices = @transform_1, window_bounds = array<i64: 32, 4>}, {transform_indices = @transform_2, window_bounds = array<i64: 16, 128>}, {transform_indices = @transform_3, window_bounds = array<i64: 8, 128>}, {transform_indices = @transform_4, window_bounds = array<i64: 32, 128>}]} {
    %c0 = arith.constant 0 : index
    %c0_0 = arith.constant 0 : index
    %0 = vector.load %arg2[%c0, %c0_0] : memref<32x16xf32, #tpu.memory_space<vmem>>, vector<32x16xf32>
    %cst = arith.constant dense<0xFF800000> : vector<32xf32>
    %1 = vector.multi_reduction <maximumf>, %0, %cst [1] : vector<32x16xf32> to vector<32xf32>
    %2 = vector.shape_cast %1 : vector<32xf32> to vector<32x1xf32>
    %3 = vector.broadcast %2 : vector<32x1xf32> to vector<32x16xf32>
    %4 = arith.subf %0, %3 : vector<32x16xf32>
    %5 = math.exp %4 : vector<32x16xf32>
    %cst_1 = arith.constant dense<0.000000e+00> : vector<32xf32>
    %6 = vector.multi_reduction <add>, %5, %cst_1 [1] : vector<32x16xf32> to vector<32xf32>
    %7 = vector.shape_cast %6 : vector<32xf32> to vector<32x1xf32>
    %8 = tpu.reciprocal %7 {approx = true} : vector<32x1xf32> -> vector<32x1xf32>
    %9 = vector.broadcast %8 : vector<32x1xf32> to vector<32x16xf32>
    %10 = arith.mulf %5, %9 : vector<32x16xf32>
    %11 = arith.truncf %10 : vector<32x16xf32> to vector<32x16xbf16>
    %c0_2 = arith.constant 0 : index
    %c0_3 = arith.constant 0 : index
    %12 = vector.load %arg4[%c0_2, %c0_3] : memref<16x128xbf16, #tpu.memory_space<vmem>>, vector<16x128xbf16>
    %cst_4 = arith.constant dense<0.000000e+00> : vector<32x128xf32>
    %13 = tpu.matmul %11, %12, %cst_4 {dimension_numbers = #tpu.dot_dimension_numbers<[1], [0], [0], [1], [0, 0, 1, 1], [], []>} : vector<32x16xbf16>, vector<16x128xbf16>, vector<32x128xf32> -> vector<32x128xf32>
    %c0_5 = arith.constant 0 : index
    %c0_6 = arith.constant 0 : index
    %14 = vector.load %arg3[%c0_5, %c0_6] : memref<32x4xf32, #tpu.memory_space<vmem>>, vector<32x4xf32>
    %15 = vector.extract_strided_slice %14 {offsets = [0, 0], sizes = [32, 1], strides = [1, 1]} : vector<32x4xf32> to vector<32x1xf32>
    %16 = vector.extract_strided_slice %14 {offsets = [0, 1], sizes = [32, 1], strides = [1, 1]} : vector<32x4xf32> to vector<32x1xf32>
    %17 = vector.extract_strided_slice %14 {offsets = [0, 2], sizes = [32, 1], strides = [1, 1]} : vector<32x4xf32> to vector<32x1xf32>
    %18 = vector.extract_strided_slice %14 {offsets = [0, 3], sizes = [32, 1], strides = [1, 1]} : vector<32x4xf32> to vector<32x1xf32>
    %cst_7 = arith.constant 5.000000e-01 : f32
    %19 = vector.broadcast %cst_7 : f32 to vector<32x1xf32>
    %20 = arith.mulf %19, %17 : vector<32x1xf32>
    %21 = arith.subf %15, %20 : vector<32x1xf32>
    %cst_8 = arith.constant 5.000000e-01 : f32
    %22 = vector.broadcast %cst_8 : f32 to vector<32x1xf32>
    %23 = arith.mulf %22, %18 : vector<32x1xf32>
    %24 = arith.subf %16, %23 : vector<32x1xf32>
    %cst_9 = arith.constant 5.000000e-01 : f32
    %25 = vector.broadcast %cst_9 : f32 to vector<32x1xf32>
    %26 = arith.mulf %25, %17 : vector<32x1xf32>
    %27 = arith.addf %15, %26 : vector<32x1xf32>
    %cst_10 = arith.constant 5.000000e-01 : f32
    %28 = vector.broadcast %cst_10 : f32 to vector<32x1xf32>
    %29 = arith.mulf %28, %18 : vector<32x1xf32>
    %30 = arith.addf %16, %29 : vector<32x1xf32>
    %31 = arith.mulf %17, %18 : vector<32x1xf32>
    %c0_11 = arith.constant 0 : index
    %c0_12 = arith.constant 0 : index
    %32 = vector.load %arg5[%c0_11, %c0_12] : memref<8x128xf32, #tpu.memory_space<vmem>>, vector<1x128xf32>
    %c1 = arith.constant 1 : index
    %c0_13 = arith.constant 0 : index
    %33 = vector.load %arg5[%c1, %c0_13] : memref<8x128xf32, #tpu.memory_space<vmem>>, vector<1x128xf32>
    %c2 = arith.constant 2 : index
    %c0_14 = arith.constant 0 : index
    %34 = vector.load %arg5[%c2, %c0_14] : memref<8x128xf32, #tpu.memory_space<vmem>>, vector<1x128xf32>
    %c3 = arith.constant 3 : index
    %c0_15 = arith.constant 0 : index
    %35 = vector.load %arg5[%c3, %c0_15] : memref<8x128xf32, #tpu.memory_space<vmem>>, vector<1x128xf32>
    %c4 = arith.constant 4 : index
    %c0_16 = arith.constant 0 : index
    %36 = vector.load %arg5[%c4, %c0_16] : memref<8x128xf32, #tpu.memory_space<vmem>>, vector<1x128xf32>
    %c5 = arith.constant 5 : index
    %c0_17 = arith.constant 0 : index
    %37 = vector.load %arg5[%c5, %c0_17] : memref<8x128xf32, #tpu.memory_space<vmem>>, vector<1x128xf32>
    %c6 = arith.constant 6 : index
    %c0_18 = arith.constant 0 : index
    %38 = vector.load %arg5[%c6, %c0_18] : memref<8x128xf32, #tpu.memory_space<vmem>>, vector<1x128xf32>
    %c7 = arith.constant 7 : index
    %c0_19 = arith.constant 0 : index
    %39 = vector.load %arg5[%c7, %c0_19] : memref<8x128xf32, #tpu.memory_space<vmem>>, vector<1x128xf32>
    %40 = arith.mulf %34, %35 : vector<1x128xf32>
    %41 = vector.broadcast %15 : vector<32x1xf32> to vector<32x128xf32>
    %42 = vector.broadcast %32 : vector<1x128xf32> to vector<32x128xf32>
    %43 = arith.subf %41, %42 : vector<32x128xf32>
    %44 = math.absf %43 : vector<32x128xf32>
    %45 = vector.broadcast %16 : vector<32x1xf32> to vector<32x128xf32>
    %46 = vector.broadcast %33 : vector<1x128xf32> to vector<32x128xf32>
    %47 = arith.subf %45, %46 : vector<32x128xf32>
    %48 = math.absf %47 : vector<32x128xf32>
    %49 = arith.addf %44, %48 : vector<32x128xf32>
    %50 = vector.broadcast %17 : vector<32x1xf32> to vector<32x128xf32>
    %51 = vector.broadcast %34 : vector<1x128xf32> to vector<32x128xf32>
    %52 = arith.subf %50, %51 : vector<32x128xf32>
    %53 = math.absf %52 : vector<32x128xf32>
    %54 = arith.addf %49, %53 : vector<32x128xf32>
    %55 = vector.broadcast %18 : vector<32x1xf32> to vector<32x128xf32>
    %56 = vector.broadcast %35 : vector<1x128xf32> to vector<32x128xf32>
    %57 = arith.subf %55, %56 : vector<32x128xf32>
    %58 = math.absf %57 : vector<32x128xf32>
    %59 = arith.addf %54, %58 : vector<32x128xf32>
    %cst_20 = arith.constant 1.000000e+00 : f32
    %60 = vector.broadcast %cst_20 : f32 to vector<32x128xf32>
    %61 = arith.mulf %60, %59 : vector<32x128xf32>
    %62 = arith.addf %13, %61 : vector<32x128xf32>
    %63 = vector.broadcast %27 : vector<32x1xf32> to vector<32x128xf32>
    %64 = vector.broadcast %38 : vector<1x128xf32> to vector<32x128xf32>
    %65 = arith.minimumf %63, %64 : vector<32x128xf32>
    %66 = vector.broadcast %21 : vector<32x1xf32> to vector<32x128xf32>
    %67 = vector.broadcast %36 : vector<1x128xf32> to vector<32x128xf32>
    %68 = arith.maximumf %66, %67 : vector<32x128xf32>
    %69 = arith.subf %65, %68 : vector<32x128xf32>
    %cst_21 = arith.constant 0.000000e+00 : f32
    %70 = vector.broadcast %cst_21 : f32 to vector<32x128xf32>
    %71 = arith.maximumf %69, %70 : vector<32x128xf32>
    %72 = vector.broadcast %30 : vector<32x1xf32> to vector<32x128xf32>
    %73 = vector.broadcast %39 : vector<1x128xf32> to vector<32x128xf32>
    %74 = arith.minimumf %72, %73 : vector<32x128xf32>
    %75 = vector.broadcast %24 : vector<32x1xf32> to vector<32x128xf32>
    %76 = vector.broadcast %37 : vector<1x128xf32> to vector<32x128xf32>
    %77 = arith.maximumf %75, %76 : vector<32x128xf32>
    %78 = arith.subf %74, %77 : vector<32x128xf32>
    %cst_22 = arith.constant 0.000000e+00 : f32
    %79 = vector.broadcast %cst_22 : f32 to vector<32x128xf32>
    %80 = arith.maximumf %78, %79 : vector<32x128xf32>
    %81 = arith.mulf %71, %80 : vector<32x128xf32>
    %82 = vector.broadcast %31 : vector<32x1xf32> to vector<32x128xf32>
    %83 = vector.broadcast %40 : vector<1x128xf32> to vector<32x128xf32>
    %84 = arith.addf %82, %83 : vector<32x128xf32>
    %85 = arith.subf %84, %81 : vector<32x128xf32>
    %86 = vector.broadcast %27 : vector<32x1xf32> to vector<32x128xf32>
    %87 = vector.broadcast %38 : vector<1x128xf32> to vector<32x128xf32>
    %88 = arith.maximumf %86, %87 : vector<32x128xf32>
    %89 = vector.broadcast %21 : vector<32x1xf32> to vector<32x128xf32>
    %90 = vector.broadcast %36 : vector<1x128xf32> to vector<32x128xf32>
    %91 = arith.minimumf %89, %90 : vector<32x128xf32>
    %92 = arith.subf %88, %91 : vector<32x128xf32>
    %cst_23 = arith.constant 0.000000e+00 : f32
    %93 = vector.broadcast %cst_23 : f32 to vector<32x128xf32>
    %94 = arith.maximumf %92, %93 : vector<32x128xf32>
    %95 = vector.broadcast %30 : vector<32x1xf32> to vector<32x128xf32>
    %96 = vector.broadcast %39 : vector<1x128xf32> to vector<32x128xf32>
    %97 = arith.maximumf %95, %96 : vector<32x128xf32>
    %98 = vector.broadcast %24 : vector<32x1xf32> to vector<32x128xf32>
    %99 = vector.broadcast %37 : vector<1x128xf32> to vector<32x128xf32>
    %100 = arith.minimumf %98, %99 : vector<32x128xf32>
    %101 = arith.subf %97, %100 : vector<32x128xf32>
    %cst_24 = arith.constant 0.000000e+00 : f32
    %102 = vector.broadcast %cst_24 : f32 to vector<32x128xf32>
    %103 = arith.maximumf %101, %102 : vector<32x128xf32>
    %104 = arith.mulf %94, %103 : vector<32x128xf32>
    %105 = arith.mulf %81, %104 : vector<32x128xf32>
    %106 = arith.subf %104, %85 : vector<32x128xf32>
    %107 = arith.mulf %106, %85 : vector<32x128xf32>
    %108 = arith.subf %105, %107 : vector<32x128xf32>
    %109 = arith.mulf %85, %104 : vector<32x128xf32>
    %cst_25 = arith.constant 9.99999996E-13 : f32
    %110 = vector.broadcast %cst_25 : f32 to vector<32x128xf32>
    %111 = arith.maximumf %109, %110 : vector<32x128xf32>
    %cst_26 = arith.constant 1.000000e+00 : f32
    %112 = vector.broadcast %cst_26 : f32 to vector<32x128xf32>
    %113 = arith.mulf %112, %108 : vector<32x128xf32>
    %114 = tpu.reciprocal %111 {approx = true} : vector<32x128xf32> -> vector<32x128xf32>
    %115 = arith.mulf %113, %114 : vector<32x128xf32>
    %116 = arith.subf %62, %115 : vector<32x128xf32>
    %c0_27 = arith.constant 0 : index
    %c0_28 = arith.constant 0 : index
    %117 = vector.load %arg6[%c0_27, %c0_28] : memref<32x128xf32, #tpu.memory_space<vmem>>, vector<32x128xf32>
    tpu.vector_store %arg6[%c0_27, %c0_28], %116 {strides = array<i32>} : memref<32x128xf32, #tpu.memory_space<vmem>>, vector<32x128xf32>,
    return
  }
  func.func @transform_0(%arg0: i32, %arg1: i32) -> (i32, i32) {
    %c0_i32 = arith.constant 0 : i32
    %c0_i32_0 = arith.constant 0 : i32
    return %arg0, %c0_i32 : i32, i32
  }
  func.func @transform_1(%arg0: i32, %arg1: i32) -> (i32, i32) {
    %c0_i32 = arith.constant 0 : i32
    %c0_i32_0 = arith.constant 0 : i32
    return %arg0, %c0_i32 : i32, i32
  }
  func.func @transform_2(%arg0: i32, %arg1: i32) -> (i32, i32) {
    %c0_i32 = arith.constant 0 : i32
    %c0_i32_0 = arith.constant 0 : i32
    return %c0_i32, %arg1 : i32, i32
  }
  func.func @transform_3(%arg0: i32, %arg1: i32) -> (i32, i32) {
    %c0_i32 = arith.constant 0 : i32
    %c0_i32_0 = arith.constant 0 : i32
    return %c0_i32, %arg1 : i32, i32
  }
  func.func @transform_4(%arg0: i32, %arg1: i32) -> (i32, i32) {
    %c0_i32 = arith.constant 0 : i32
    return %arg0, %arg1 : i32, i32
  }
}

</mosaic_0001>

<llo_original>
// kernel: tpu_custom_call.1
$region0: #{tpu_custom_call.1}
  #allocation0 [shape = 'u32[]', space=smem, size = 0x4, offset = 0x4, fixed_abs, tag = 'smem constant byte address 0x4 - core index']
  #allocation1 [shape = 'u32[144,128]{1,0:T(1,128)}', space=vmem, size = 0x12000, scoped, tag = 'internal scratch']
  %s0 = inlined_call_operand.vmem [shape: f32[64,16], index: 0, kind: input, shape index: {}]
  %s1 = inlined_call_operand.vmem [shape: f32[64,4], index: 1, kind: input, shape index: {}]
  %s2 = inlined_call_operand.vmem [shape: bf16[16,128], index: 2, kind: input, shape index: {}]
  %s3 = inlined_call_operand.vmem [shape: f32[8,128], index: 3, kind: input, shape index: {}]
  %s4 = inlined_call_operand.hbm [shape: f32[64,128], index: 4, kind: output, shape index: {}]
  %s5 = sld [smem:[#allocation0]]
  $region49: #{tpu_custom_call.1} parent=0
    _
  %s7 = ssub.s32 1, %s5
  %s8 = scalar_select 0, %s7, %s5
  $region1: #{tpu_custom_call.1} parent=0
    #allocation2 [shape = 'u8[32768]{0}', space=vmem, size = 0x8000, scoped, tag = 'output window, operand 0']
    #allocation3 [shape = 's32[2]{0}', space=sflag, size = 0x8, scoped, tag = 'scoped memory for tpu_custom_call.1']
    %9 = vsyncpa [#allocation3], 0
    %s10 = scalar_lea.sflag [#allocation3], 1
    %11 = vsyncpa %s10, 0
    loop: start=0, step=1, limit=4
    $region2: #{tpu_custom_call.1} parent=1 // loop_pre_header
      _
    $region3: #{tpu_custom_call.1} parent=1 // loop_header
      %s13 = sphi 0, %s17
      %p14 = scmp.ge.s32.totalorder %s13, 4
      %s20 = sphi 0, %s32
      %s21 = sphi 0, %s28
      %s22 = sphi 0, %s20
      %s23 = sphi 0, %s21
      %s24 = sphi 0, %s22
      %s25 = sphi 0, %s23
      %s35 = sphi 0, %s37
      %s38 = sphi 0, %s35
      %s39 = sphi 0, %s38
      %s55 = sphi 0, %s39
      %s61 = sphi 0, %s63
      %s64 = sphi 0, %s61
      %s65 = sphi 0, %s64
      %s81 = sphi 0, %s65
      %s87 = sphi 0, %s89
      %s90 = sphi 0, %s87
      %s91 = sphi 0, %s90
      %s107 = sphi 0, %s91
      %s113 = sphi 0, %s115
      %s116 = sphi 0, %s113
      %s117 = sphi 0, %s116
      %s133 = sphi 0, %s117
      %s141 = sphi 0, %s143
      %s144 = sphi 0, %s141
      %s145 = sphi 0, %s144
      %s161 = sphi 0, %s145
    $region4: #{tpu_custom_call.1} parent=1 // loop_header_branch
      %16 = sbr.rel (%p14) target = $region8
    $region5: #{tpu_custom_call.1} parent=1 // loop_body
      %s18 = ssub.s32 %s13, 1
      %s19 = ssub.s32 %s13, 2
      %s26 = sadd.s32 1, %s21
      %p27 = scmp.ge.s32.totalorder %s26, 1
      %s28 = scalar_select %p27, 0, %s26
      %s29 = sadd.s32 1, %s20
      %s30 = scalar_select %p27, %s29, %s20
      %p31 = scmp.ge.s32.totalorder %s30, 2
      %s32 = scalar_select %p31, 0, %s30
      %s33 = ssub.s32 %s20, %s32
      %p34 = scmp.eq.s32.totalorder %s33, 0
      %s36 = sadd.s32 %s35, 1
      %s37 = scalar_select %p34, %s35, %s36
      %p40 = pneg %p34
      %p41 = scmp.eq.s32.totalorder %s13, 1
      %p42 = por %p40, %p41
      %p43 = scmp.ne.s32.totalorder %s35, %s38
      %p44 = scmp.eq.s32.totalorder %s13, 0
      %p45 = por %p43, %p44
      %p46 = scmp.ne.s32.totalorder %s35, %s38
      %p47 = scmp.eq.s32.totalorder %s18, 1
      %p48 = por %p46, %p47
      %p49 = scmp.ne.s32.totalorder %s38, %s39
      %p50 = scmp.eq.s32.totalorder %s18, 0
      %p51 = por %p49, %p50
      %p52 = scmp.ne.s32.totalorder %s38, %s39
      %p53 = scmp.eq.s32.totalorder %s19, 1
      %p54 = por %p52, %p53
      %p56 = scmp.ne.s32.totalorder %s39, %s55
      %p57 = scmp.eq.s32.totalorder %s19, 0
      %p58 = por %p56, %p57
      %s59 = ssub.s32 %s20, %s32
      %p60 = scmp.eq.s32.totalorder %s59, 0
      %s62 = sadd.s32 %s61, 1
      %s63 = scalar_select %p60, %s61, %s62
      %p66 = pneg %p60
      %p67 = scmp.eq.s32.totalorder %s13, 1
      %p68 = por %p66, %p67
      %p69 = scmp.ne.s32.totalorder %s61, %s64
      %p70 = scmp.eq.s32.totalorder %s13, 0
      %p71 = por %p69, %p70
      %p72 = scmp.ne.s32.totalorder %s61, %s64
      %p73 = scmp.eq.s32.totalorder %s18, 1
      %p74 = por %p72, %p73
      %p75 = scmp.ne.s32.totalorder %s64, %s65
      %p76 = scmp.eq.s32.totalorder %s18, 0
      %p77 = por %p75, %p76
      %p78 = scmp.ne.s32.totalorder %s64, %s65
      %p79 = scmp.eq.s32.totalorder %s19, 1
      %p80 = por %p78, %p79
      %p82 = scmp.ne.s32.totalorder %s65, %s81
      %p83 = scmp.eq.s32.totalorder %s19, 0
      %p84 = por %p82, %p83
      %s85 = ssub.s32 %s21, %s28
      %p86 = scmp.eq.s32.totalorder %s85, 0
      %s88 = sadd.s32 %s87, 1
      %s89 = scalar_select %p86, %s87, %s88
      %p92 = pneg %p86
      %p93 = scmp.eq.s32.totalorder %s13, 1
      %p94 = por %p92, %p93
      %p95 = scmp.ne.s32.totalorder %s87, %s90
      %p96 = scmp.eq.s32.totalorder %s13, 0
      %p97 = por %p95, %p96
      %p98 = scmp.ne.s32.totalorder %s87, %s90
      %p99 = scmp.eq.s32.totalorder %s18, 1
      %p100 = por %p98, %p99
      %p101 = scmp.ne.s32.totalorder %s90, %s91
      %p102 = scmp.eq.s32.totalorder %s18, 0
      %p103 = por %p101, %p102
      %p104 = scmp.ne.s32.totalorder %s90, %s91
      %p105 = scmp.eq.s32.totalorder %s19, 1
      %p106 = por %p104, %p105
      %p108 = scmp.ne.s32.totalorder %s91, %s107
      %p109 = scmp.eq.s32.totalorder %s19, 0
      %p110 = por %p108, %p109
      %s111 = ssub.s32 %s21, %s28
      %p112 = scmp.eq.s32.totalorder %s111, 0
      %s114 = sadd.s32 %s113, 1
      %s115 = scalar_select %p112, %s113, %s114
      %p118 = pneg %p112
      %p119 = scmp.eq.s32.totalorder %s13, 1
      %p120 = por %p118, %p119
      %p121 = scmp.ne.s32.totalorder %s113, %s116
      %p122 = scmp.eq.s32.totalorder %s13, 0
      %p123 = por %p121, %p122
      %p124 = scmp.ne.s32.totalorder %s113, %s116
      %p125 = scmp.eq.s32.totalorder %s18, 1
      %p126 = por %p124, %p125
      %p127 = scmp.ne.s32.totalorder %s116, %s117
      %p128 = scmp.eq.s32.totalorder %s18, 0
      %p129 = por %p127, %p128
      %p130 = scmp.ne.s32.totalorder %s116, %s117
      %p131 = scmp.eq.s32.totalorder %s19, 1
      %p132 = por %p130, %p131
      %p134 = scmp.ne.s32.totalorder %s117, %s133
      %p135 = scmp.eq.s32.totalorder %s19, 0
      %p136 = por %p134, %p135
      %s137 = ssub.s32 %s20, %s32
      %s138 = ssub.s32 %s21, %s28
      %s139 = sor.u32 %s137, %s138
      %p140 = scmp.eq.s32.totalorder %s139, 0
      %s142 = sadd.s32 %s141, 1
      %s143 = scalar_select %p140, %s141, %s142
      %p146 = pneg %p140
      %p147 = scmp.eq.s32.totalorder %s13, 1
      %p148 = por %p146, %p147
      %p149 = scmp.ne.s32.totalorder %s141, %s144
      %p150 = scmp.eq.s32.totalorder %s13, 0
      %p151 = por %p149, %p150
      %p152 = scmp.ne.s32.totalorder %s141, %s144
      %p153 = scmp.eq.s32.totalorder %s18, 1
      %p154 = por %p152, %p153
      %p155 = scmp.ne.s32.totalorder %s144, %s145
      %p156 = scmp.eq.s32.totalorder %s18, 0
      %p157 = por %p155, %p156
      %p158 = scmp.ne.s32.totalorder %s144, %s145
      %p159 = scmp.eq.s32.totalorder %s19, 1
      %p160 = por %p158, %p159
      %p162 = scmp.ne.s32.totalorder %s145, %s161
      %p163 = scmp.eq.s32.totalorder %s19, 0
      %p164 = por %p162, %p163
      %p165 = scmp.le.s32.totalorder 1, %s13
      %p166 = scmp.lt.s32.totalorder %s13, 3
      %p167 = pnand %p165, %p166
      %p168 = pneg %p167
      // Predicated region
      $region9: #{tpu_custom_call.1} parent=5 // pred_check
        _
      $region10: #{tpu_custom_call.1} parent=5 // pred_check_branch
        %170 = sbr.rel (%p167) target = $region12
      $region11: #{tpu_custom_call.1} parent=5 // pred_region
        %s171 = ssub.s32 %s13, 1
        // Predicated region
        $region13: #{tpu_custom_call.1} parent=11 // pred_check
          %p172 = pneg %p103
        $region14: #{tpu_custom_call.1} parent=11 // pred_check_branch
          %174 = sbr.rel (%p172) target = $region16
        $region15: #{tpu_custom_call.1} parent=11 // pred_region
          %p175 = scmp.lt.s32.totalorder %s23, 0
          %s176 = scalar_select %p175, %s23, 0
          %s177 = smul.addr %s176, 4
          %s178 = scalar_lea.vmem %s2, %s177
        $region16: #{tpu_custom_call.1} parent=11 // pred_fallthru
          _
        // Predicated region
        $region17: #{tpu_custom_call.1} parent=11 // pred_check
          %p179 = pneg %p129
        $region18: #{tpu_custom_call.1} parent=11 // pred_check_branch
          %181 = sbr.rel (%p179) target = $region20
        $region19: #{tpu_custom_call.1} parent=11 // pred_region
          %p182 = scmp.lt.s32.totalorder %s23, 0
          %s183 = scalar_select %p182, %s23, 0
          %s184 = smul.addr %s183, 8
          %s185 = scalar_lea.vmem %s3, %s184
        $region20: #{tpu_custom_call.1} parent=11 // pred_fallthru
          _
      $region12: #{tpu_custom_call.1} parent=5 // pred_fallthru
        _
      %p186 = scmp.lt.s32.totalorder %s13, 2
      // Predicated region
      $region21: #{tpu_custom_call.1} parent=5 // pred_check
        %p187 = pneg %p186
      $region22: #{tpu_custom_call.1} parent=5 // pred_check_branch
        %189 = sbr.rel (%p187) target = $region24
      $region23: #{tpu_custom_call.1} parent=5 // pred_region
        // Predicated region
        $region25: #{tpu_custom_call.1} parent=23 // pred_check
          %p190 = pneg %p45
        $region26: #{tpu_custom_call.1} parent=23 // pred_check_branch
          %192 = sbr.rel (%p190) target = $region28
        $region27: #{tpu_custom_call.1} parent=23 // pred_region
          %s193 = smul.u32 4, %s20
          %p194 = scmp.lt.s32.totalorder %s193, 7
          %s195 = scalar_select %p194, %s193, 7
          %s196 = smul.addr %s195, 8
          %s197 = scalar_lea.vmem %s0, %s196
          %s198 = smul.u32 4, %s20
        $region28: #{tpu_custom_call.1} parent=23 // pred_fallthru
          _
        // Predicated region
        $region29: #{tpu_custom_call.1} parent=23 // pred_check
          %p199 = pneg %p71
        $region30: #{tpu_custom_call.1} parent=23 // pred_check_branch
          %201 = sbr.rel (%p199) target = $region32
        $region31: #{tpu_custom_call.1} parent=23 // pred_region
          %s202 = smul.u32 4, %s20
          %p203 = scmp.lt.s32.totalorder %s202, 7
          %s204 = scalar_select %p203, %s202, 7
          %s205 = smul.addr %s204, 8
          %s206 = scalar_lea.vmem %s1, %s205
          %s207 = smul.u32 4, %s20
        $region32: #{tpu_custom_call.1} parent=23 // pred_fallthru
          _
      $region24: #{tpu_custom_call.1} parent=5 // pred_fallthru
        _
      %p208 = scmp.le.s32.totalorder 1, %s13
      %p209 = scmp.lt.s32.totalorder %s13, 3
      %p210 = pnand %p208, %p209
      %p211 = pneg %p210
      // Predicated region
      $region33: #{tpu_custom_call.1} parent=5 // pred_check
        _
      $region34: #{tpu_custom_call.1} parent=5 // pred_check_branch
        %213 = sbr.rel (%p210) target = $region36
      $region35: #{tpu_custom_call.1} parent=5 // pred_region
        %s214 = ssub.s32 %s13, 1
        %s215 = smul.u32 4, %s22
        %p216 = scmp.lt.s32.totalorder %s215, 7
        %s217 = scalar_select %p216, %s215, 7
        %s218 = smul.addr %s217, 8
        %s219 = scalar_lea.vmem %s0, %s218
        %p220 = pneg %p51
        %p221 = pneg %p48
        %s222 = smul.u32 4, %s22
        %p223 = scmp.lt.s32.totalorder %s222, 7
        %s224 = scalar_select %p223, %s222, 7
        %s225 = smul.addr %s224, 8
        %s226 = scalar_lea.vmem %s1, %s225
        %p227 = pneg %p77
        %p228 = pneg %p74
        %p229 = scmp.lt.s32.totalorder %s23, 0
        %s230 = scalar_select %p229, %s23, 0
        %s231 = smul.addr %s230, 4
        %s232 = scalar_lea.vmem %s2, %s231
        %p233 = pneg %p103
        %p234 = pneg %p100
        %p235 = scmp.lt.s32.totalorder %s23, 0
        %s236 = scalar_select %p235, %s23, 0
        %s237 = smul.addr %s236, 8
        %s238 = scalar_lea.vmem %s3, %s237
        %p239 = pneg %p129
        %p240 = pneg %p126
        %p241 = pneg %p157
        %p242 = pneg %p154
        %s243 = sand.u32 %s144, 1
        %s244 = scalar_lea.sflag [#allocation3], %s243
        %s245 = sand.u32 %s144, 1
        %s246 = smul.addr %s245, 32
        %s247 = scalar_lea.vmem [#allocation2], %s246
        %s248 = smul.u32 4, %s22
        %p249 = scmp.lt.s32.totalorder %s248, 7
        %s250 = scalar_select %p249, %s248, 7
        %s251 = smul.addr %s250, 8
        %s252 = scalar_lea.vmem %s0, %s251
        %s253 = smul.u32 4, %s22
        %s254 = smul.u32 4, %s22
        %p255 = scmp.lt.s32.totalorder %s254, 7
        %s256 = scalar_select %p255, %s254, 7
        %s257 = smul.addr %s256, 8
        %s258 = scalar_lea.vmem %s1, %s257
        %s259 = smul.u32 4, %s22
        %p260 = scmp.lt.s32.totalorder %s23, 0
        %s261 = scalar_select %p260, %s23, 0
        %s262 = smul.addr %s261, 4
        %s263 = scalar_lea.vmem %s2, %s262
        %p264 = scmp.lt.s32.totalorder %s23, 0
        %s265 = scalar_select %p264, %s23, 0
        %s266 = smul.addr %s265, 8
        %s267 = scalar_lea.vmem %s3, %s266
        %s268 = smul.u32 4, %s22
        %v270 = vld [vmem:[%s252] sm:$0xff]
        %v271 = vld [vmem:[%s252 + $0x8] sm:$0xff]
        %v272 = vld [vmem:[%s252 + $0x10] sm:$0xff]
        %v273 = vld [vmem:[%s252 + $0x18] sm:$0xff]
        %vm274 = vcmask 130048
        %v275 = vsel %vm274, %v270, -inf
        %276 = vmax.xlane.f32.xlu0 %v275
        %v277 = vpop.xlane.xlu0 %276
        %v278 = vsel %vm274, %v271, -inf
        %279 = vmax.xlane.f32.xlu0 %v278
        %v280 = vpop.xlane.xlu0 %279
        %v281 = vsel %vm274, %v272, -inf
        %282 = vmax.xlane.f32.xlu0 %v281
        %v283 = vpop.xlane.xlu0 %282
        %v284 = vsel %vm274, %v273, -inf
        %285 = vmax.xlane.f32.xlu0 %v284
        %v286 = vpop.xlane.xlu0 %285
        %v287 = vsub.f32 %v270, %v277
        %v288 = vsub.f32 %v271, %v280
        %v289 = vsub.f32 %v272, %v283
        %v290 = vsub.f32 %v273, %v286
        %v291 = vmul.f32 %v287, 1.442695
        %v292 = vpow.pop %v291
        %v293 = vmul.f32 %v288, 1.442695
        %v294 = vpow.pop %v293
        %v295 = vmul.f32 %v289, 1.442695
        %v296 = vpow.pop %v295
        %v297 = vmul.f32 %v290, 1.442695
        %v298 = vpow.pop %v297
        %v299 = vsel %vm274, %v292, 0.0
        %300 = vadd.xlane.f32.xlu0 %v299
        %v301 = vpop.xlane.xlu0 %300
        %v302 = vsel %vm274, %v294, 0.0
        %303 = vadd.xlane.f32.xlu0 %v302
        %v304 = vpop.xlane.xlu0 %303
        %v305 = vsel %vm274, %v296, 0.0
        %306 = vadd.xlane.f32.xlu0 %v305
        %v307 = vpop.xlane.xlu0 %306
        %v308 = vsel %vm274, %v298, 0.0
        %309 = vadd.xlane.f32.xlu0 %v308
        %v310 = vpop.xlane.xlu0 %309
        %v311 = vrcp.pop %v301
        %v312 = vrcp.pop %v304
        %v313 = vrcp.pop %v307
        %v314 = vrcp.pop %v310
        %v315 = vmul.f32 %v292, %v311
        %v316 = vmul.f32 %v294, %v312
        %v317 = vmul.f32 %v296, %v313
        %v318 = vmul.f32 %v298, %v314
        %v319 = vpack.c.bf16 %v316, %v315
        %v320 = vpack.c.bf16 %v318, %v317
        %v321 = vld [vmem:[%s263] sm:$0xf]
        %v322 = vld [vmem:[%s263 + $0x4] sm:$0xf]
        %v323 = vld [vmem:[%s258] sm:$0xff]
        %v324 = vld [vmem:[%s258 + $0x8] sm:$0xff]
        %v325 = vld [vmem:[%s258 + $0x10] sm:$0xff]
        %v326 = vld [vmem:[%s258 + $0x18] sm:$0xff]
        %v327 = vmul.f32 %v323, 0.5
        %v328 = vmul.f32 %v324, 0.5
        %v329 = vmul.f32 %v325, 0.5
        %v330 = vmul.f32 %v326, 0.5
        %335 = vrot.lane.b32.xlu0 %v327, 126
        %v336 = vpop.permute.xlu0 %335
        %337 = vrot.lane.b32.xlu0 %v328, 126
        %v338 = vpop.permute.xlu0 %337
        %339 = vrot.lane.b32.xlu0 %v329, 126
        %v340 = vpop.permute.xlu0 %339
        %341 = vrot.lane.b32.xlu0 %v330, 126
        %v342 = vpop.permute.xlu0 %341
        %v347 = vsub.f32 %v323, %v336
        %v348 = vsub.f32 %v324, %v338
        %v349 = vsub.f32 %v325, %v340
        %v350 = vsub.f32 %v326, %v342
        %v351 = vadd.f32 %v323, %v336
        %v352 = vadd.f32 %v324, %v338
        %v353 = vadd.f32 %v325, %v340
        %v354 = vadd.f32 %v326, %v342
        %359 = vrot.lane.b32.xlu0 %v323, 127
        %v360 = vpop.permute.xlu0 %359
        %361 = vrot.lane.b32.xlu0 %v324, 127
        %v362 = vpop.permute.xlu0 %361
        %363 = vrot.lane.b32.xlu0 %v325, 127
        %v364 = vpop.permute.xlu0 %363
        %365 = vrot.lane.b32.xlu0 %v326, 127
        %v366 = vpop.permute.xlu0 %365
        %v371 = vmul.f32 %v323, %v360
        %v372 = vmul.f32 %v324, %v362
        %v373 = vmul.f32 %v325, %v364
        %v374 = vmul.f32 %v326, %v366
        %v375 = vld [vmem:[%s267] sm:$0x1]
        %v376 = vld [vmem:[%s267 + $0x1] sm:$0x1]
        %v377 = vld [vmem:[%s267 + $0x2] sm:$0x1]
        %v378 = vld [vmem:[%s267 + $0x3] sm:$0x1]
        %v379 = vld [vmem:[%s267 + $0x4] sm:$0x1]
        %v380 = vld [vmem:[%s267 + $0x5] sm:$0x1]
        %v381 = vld [vmem:[%s267 + $0x6] sm:$0x1]
        %v382 = vld [vmem:[%s267 + $0x7] sm:$0x1]
        %v383 = vmul.f32 %v377, %v378
        %384 = vset.pattern.permute.xlu0 0
        %385 = vperm.xlu0 %384, %v323
        %v386 = vpop.permute.xlu0 %385
        %388 = vset.pattern.permute.xlu0 0
        %389 = vperm.xlu0 %388, %v324
        %v390 = vpop.permute.xlu0 %389
        %392 = vset.pattern.permute.xlu0 0
        %393 = vperm.xlu0 %392, %v325
        %v394 = vpop.permute.xlu0 %393
        %396 = vset.pattern.permute.xlu0 0
        %397 = vperm.xlu0 %396, %v326
        %v398 = vpop.permute.xlu0 %397
        %v400 = vlaneseq
        %v401 = vshrl.u32 %v400, 7
        %v402 = vsub.s32 0, %v401
        %v403 = vrot.slane %v375, %v402
        %v404 = vsub.f32 %v386, %v403
        %v405 = vsub.f32 %v390, %v403
        %v406 = vsub.f32 %v394, %v403
        %v407 = vsub.f32 %v398, %v403
        %v408 = vand.u32 2147483647, %v404
        %v409 = vand.u32 2147483647, %v405
        %v410 = vand.u32 2147483647, %v406
        %v411 = vand.u32 2147483647, %v407
        %412 = vset.pattern.permute.xlu0 1
        %413 = vperm.xlu0 %412, %v323
        %v414 = vpop.permute.xlu0 %413
        %416 = vset.pattern.permute.xlu0 1
        %417 = vperm.xlu0 %416, %v324
        %v418 = vpop.permute.xlu0 %417
        %420 = vset.pattern.permute.xlu0 1
        %421 = vperm.xlu0 %420, %v325
        %v422 = vpop.permute.xlu0 %421
        %424 = vset.pattern.permute.xlu0 1
        %425 = vperm.xlu0 %424, %v326
        %v426 = vpop.permute.xlu0 %425
        %v428 = vlaneseq
        %v429 = vshrl.u32 %v428, 7
        %v430 = vsub.s32 0, %v429
        %v431 = vrot.slane %v376, %v430
        %v432 = vsub.f32 %v414, %v431
        %v433 = vsub.f32 %v418, %v431
        %v434 = vsub.f32 %v422, %v431
        %v435 = vsub.f32 %v426, %v431
        %v436 = vand.u32 2147483647, %v432
        %v437 = vand.u32 2147483647, %v433
        %v438 = vand.u32 2147483647, %v434
        %v439 = vand.u32 2147483647, %v435
        %v440 = vadd.f32 %v408, %v436
        %v441 = vadd.f32 %v409, %v437
        %v442 = vadd.f32 %v410, %v438
        %v443 = vadd.f32 %v411, %v439
        %444 = vset.pattern.permute.xlu0 2
        %445 = vperm.xlu0 %444, %v323
        %v446 = vpop.permute.xlu0 %445
        %448 = vset.pattern.permute.xlu0 2
        %449 = vperm.xlu0 %448, %v324
        %v450 = vpop.permute.xlu0 %449
        %452 = vset.pattern.permute.xlu0 2
        %453 = vperm.xlu0 %452, %v325
        %v454 = vpop.permute.xlu0 %453
        %456 = vset.pattern.permute.xlu0 2
        %457 = vperm.xlu0 %456, %v326
        %v458 = vpop.permute.xlu0 %457
        %v460 = vlaneseq
        %v461 = vshrl.u32 %v460, 7
        %v462 = vsub.s32 0, %v461
        %v463 = vrot.slane %v377, %v462
        %v464 = vsub.f32 %v446, %v463
        %v465 = vsub.f32 %v450, %v463
        %v466 = vsub.f32 %v454, %v463
        %v467 = vsub.f32 %v458, %v463
        %v468 = vand.u32 2147483647, %v464
        %v469 = vand.u32 2147483647, %v465
        %v470 = vand.u32 2147483647, %v466
        %v471 = vand.u32 2147483647, %v467
        %v472 = vadd.f32 %v440, %v468
        %v473 = vadd.f32 %v441, %v469
        %v474 = vadd.f32 %v442, %v470
        %v475 = vadd.f32 %v443, %v471
        %476 = vset.pattern.permute.xlu0 3
        %477 = vperm.xlu0 %476, %v323
        %v478 = vpop.permute.xlu0 %477
        %480 = vset.pattern.permute.xlu0 3
        %481 = vperm.xlu0 %480, %v324
        %v482 = vpop.permute.xlu0 %481
        %484 = vset.pattern.permute.xlu0 3
        %485 = vperm.xlu0 %484, %v325
        %v486 = vpop.permute.xlu0 %485
        %488 = vset.pattern.permute.xlu0 3
        %489 = vperm.xlu0 %488, %v326
        %v490 = vpop.permute.xlu0 %489
        %v492 = vlaneseq
        %v493 = vshrl.u32 %v492, 7
        %v494 = vsub.s32 0, %v493
        %v495 = vrot.slane %v378, %v494
        %v496 = vsub.f32 %v478, %v495
        %v497 = vsub.f32 %v482, %v495
        %v498 = vsub.f32 %v486, %v495
        %v499 = vsub.f32 %v490, %v495
        %v500 = vand.u32 2147483647, %v496
        %v501 = vand.u32 2147483647, %v497
        %v502 = vand.u32 2147483647, %v498
        %v503 = vand.u32 2147483647, %v499
        %v504 = vadd.f32 %v472, %v500
        %v505 = vadd.f32 %v473, %v501
        %v506 = vadd.f32 %v474, %v502
        %v507 = vadd.f32 %v475, %v503
        %v510 = vunpack.c.l.b16 %v321
        %v511 = vunpack.c.l.b16 %v322
        %v512 = vpack.c.b16 %v511, %v510
        %v515 = vsel %vm274, %v319, 0
        %v518 = vsel %vm274, %v320, 0
        %520 = vmatprep.subr.bf16.mxu0 0
        %521 = vmatpush1.bf16.msra.mxu0 0
        %522 = vmatprep.subr.bf16.mxu0 0
        %523 = vmatpush1.bf16.msra.mxu0 0
        %524 = vmatprep.subr.bf16.mxu0 0
        %525 = vmatpush1.bf16.msra.mxu0 0
        %526 = vmatprep.subr.bf16.mxu0 0
        %527 = vmatpush1.bf16.msra.mxu0 0
        %528 = vmatprep.subr.bf16.mxu0 0
        %529 = vmatpush1.bf16.msra.mxu0 0
        %530 = vmatprep.subr.bf16.mxu0 0
        %531 = vmatpush1.bf16.msra.mxu0 0
        %532 = vmatprep.subr.bf16.mxu0 0
        %533 = vmatpush1.bf16.msra.mxu0 0
        %534 = vmatprep.subr.bf16.mxu0 0
        %535 = vmatpush1.bf16.msra.mxu0 %v512
        %536 = vmatprep.subr.bf16.mxu0 0
        %537 = vmatpush2.bf16.msra.mxu0 0
        %538 = vmatprep.subr.bf16.mxu0 0
        %539 = vmatpush2.bf16.msra.mxu0 0
        %540 = vmatprep.subr.bf16.mxu0 0
        %541 = vmatpush2.bf16.msra.mxu0 0
        %542 = vmatprep.subr.bf16.mxu0 0
        %543 = vmatpush2.bf16.msra.mxu0 0
        %544 = vmatprep.subr.bf16.mxu0 0
        %545 = vmatpush2.bf16.msra.mxu0 0
        %546 = vmatprep.subr.bf16.mxu0 0
        %547 = vmatpush2.bf16.msra.mxu0 0
        %548 = vmatprep.subr.bf16.mxu0 0
        %549 = vmatpush2.bf16.msra.mxu0 0
        %550 = vmatprep.subr.bf16.mxu0 0
        %551 = vmatpush2.bf16.msra.mxu0 0
        %552 = vmatprep.mubr.bf16.mxu0 0
        %553 = vmatmul.mubr.bf16.gmra.mxu0 %v515
        %v554 = vpop.f32.mrf.mxu0
        %v555 = vadd.f32 %v504, %v554
        %v556 = vpop.f32.mrf.mxu0
        %v557 = vpop.f32.mrf.mxu0
        %v558 = vadd.f32 %v505, %v557
        %v559 = vpop.f32.mrf.mxu0
        %560 = vmatprep.mubr.bf16.mxu0 0
        %561 = vmatmul.mubr.bf16.gmra.mxu0 %v518
        %v562 = vpop.f32.mrf.mxu0
        %v563 = vadd.f32 %v506, %v562
        %v564 = vpop.f32.mrf.mxu0
        %v565 = vpop.f32.mrf.mxu0
        %v566 = vadd.f32 %v507, %v565
        %v567 = vpop.f32.mrf.mxu0
        %568 = vdwg.mxu0
        %570 = vset.pattern.permute.xlu0 0
        %571 = vperm.xlu0 %570, %v351
        %v572 = vpop.permute.xlu0 %571
        %575 = vset.pattern.permute.xlu0 0
        %576 = vperm.xlu0 %575, %v352
        %v577 = vpop.permute.xlu0 %576
        %580 = vset.pattern.permute.xlu0 0
        %581 = vperm.xlu0 %580, %v353
        %v582 = vpop.permute.xlu0 %581
        %585 = vset.pattern.permute.xlu0 0
        %586 = vperm.xlu0 %585, %v354
        %v587 = vpop.permute.xlu0 %586
        %v589 = vlaneseq
        %v590 = vshrl.u32 %v589, 7
        %v591 = vsub.s32 0, %v590
        %v592 = vrot.slane %v381, %v591
        %v593 = vmin.f32 %v572, %v592
        %v594 = vmin.f32 %v577, %v592
        %v595 = vmin.f32 %v582, %v592
        %v596 = vmin.f32 %v587, %v592
        %598 = vset.pattern.permute.xlu0 0
        %599 = vperm.xlu0 %598, %v347
        %v600 = vpop.permute.xlu0 %599
        %603 = vset.pattern.permute.xlu0 0
        %604 = vperm.xlu0 %603, %v348
        %v605 = vpop.permute.xlu0 %604
        %608 = vset.pattern.permute.xlu0 0
        %609 = vperm.xlu0 %608, %v349
        %v610 = vpop.permute.xlu0 %609
        %613 = vset.pattern.permute.xlu0 0
        %614 = vperm.xlu0 %613, %v350
        %v615 = vpop.permute.xlu0 %614
        %v617 = vlaneseq
        %v618 = vshrl.u32 %v617, 7
        %v619 = vsub.s32 0, %v618
        %v620 = vrot.slane %v379, %v619
        %v621 = vmax.f32 %v600, %v620
        %v622 = vmax.f32 %v605, %v620
        %v623 = vmax.f32 %v610, %v620
        %v624 = vmax.f32 %v615, %v620
        %v625 = vsub.f32 %v593, %v621
        %v626 = vsub.f32 %v594, %v622
        %v627 = vsub.f32 %v595, %v623
        %v628 = vsub.f32 %v596, %v624
        %v629 = vmax.f32 %v625, 0.0
        %v630 = vmax.f32 %v626, 0.0
        %v631 = vmax.f32 %v627, 0.0
        %v632 = vmax.f32 %v628, 0.0
        %633 = vset.pattern.permute.xlu0 1
        %634 = vperm.xlu0 %633, %v351
        %v635 = vpop.permute.xlu0 %634
        %637 = vset.pattern.permute.xlu0 1
        %638 = vperm.xlu0 %637, %v352
        %v639 = vpop.permute.xlu0 %638
        %641 = vset.pattern.permute.xlu0 1
        %642 = vperm.xlu0 %641, %v353
        %v643 = vpop.permute.xlu0 %642
        %645 = vset.pattern.permute.xlu0 1
        %646 = vperm.xlu0 %645, %v354
        %v647 = vpop.permute.xlu0 %646
        %v649 = vlaneseq
        %v650 = vshrl.u32 %v649, 7
        %v651 = vsub.s32 0, %v650
        %v652 = vrot.slane %v382, %v651
        %v653 = vmin.f32 %v635, %v652
        %v654 = vmin.f32 %v639, %v652
        %v655 = vmin.f32 %v643, %v652
        %v656 = vmin.f32 %v647, %v652
        %657 = vset.pattern.permute.xlu0 1
        %658 = vperm.xlu0 %657, %v347
        %v659 = vpop.permute.xlu0 %658
        %661 = vset.pattern.permute.xlu0 1
        %662 = vperm.xlu0 %661, %v348
        %v663 = vpop.permute.xlu0 %662
        %665 = vset.pattern.permute.xlu0 1
        %666 = vperm.xlu0 %665, %v349
        %v667 = vpop.permute.xlu0 %666
        %669 = vset.pattern.permute.xlu0 1
        %670 = vperm.xlu0 %669, %v350
        %v671 = vpop.permute.xlu0 %670
        %v673 = vlaneseq
        %v674 = vshrl.u32 %v673, 7
        %v675 = vsub.s32 0, %v674
        %v676 = vrot.slane %v380, %v675
        %v677 = vmax.f32 %v659, %v676
        %v678 = vmax.f32 %v663, %v676
        %v679 = vmax.f32 %v667, %v676
        %v680 = vmax.f32 %v671, %v676
        %v681 = vsub.f32 %v653, %v677
        %v682 = vsub.f32 %v654, %v678
        %v683 = vsub.f32 %v655, %v679
        %v684 = vsub.f32 %v656, %v680
        %v685 = vmax.f32 %v681, 0.0
        %v686 = vmax.f32 %v682, 0.0
        %v687 = vmax.f32 %v683, 0.0
        %v688 = vmax.f32 %v684, 0.0
        %v689 = vmul.f32 %v629, %v685
        %v690 = vmul.f32 %v630, %v686
        %v691 = vmul.f32 %v631, %v687
        %v692 = vmul.f32 %v632, %v688
        %694 = vset.pattern.permute.xlu0 2
        %695 = vperm.xlu0 %694, %v371
        %v696 = vpop.permute.xlu0 %695
        %699 = vset.pattern.permute.xlu0 2
        %700 = vperm.xlu0 %699, %v372
        %v701 = vpop.permute.xlu0 %700
        %704 = vset.pattern.permute.xlu0 2
        %705 = vperm.xlu0 %704, %v373
        %v706 = vpop.permute.xlu0 %705
        %709 = vset.pattern.permute.xlu0 2
        %710 = vperm.xlu0 %709, %v374
        %v711 = vpop.permute.xlu0 %710
        %v713 = vlaneseq
        %v714 = vshrl.u32 %v713, 7
        %v715 = vsub.s32 0, %v714
        %v716 = vrot.slane %v383, %v715
        %v717 = vadd.f32 %v696, %v716
        %v718 = vadd.f32 %v701, %v716
        %v719 = vadd.f32 %v706, %v716
        %v720 = vadd.f32 %v711, %v716
        %v721 = vsub.f32 %v717, %v689
        %v722 = vsub.f32 %v718, %v690
        %v723 = vsub.f32 %v719, %v691
        %v724 = vsub.f32 %v720, %v692
        %v725 = vmax.f32 %v572, %v592
        %v726 = vmax.f32 %v577, %v592
        %v727 = vmax.f32 %v582, %v592
        %v728 = vmax.f32 %v587, %v592
        %v729 = vmin.f32 %v600, %v620
        %v730 = vmin.f32 %v605, %v620
        %v731 = vmin.f32 %v610, %v620
        %v732 = vmin.f32 %v615, %v620
        %v733 = vsub.f32 %v725, %v729
        %v734 = vsub.f32 %v726, %v730
        %v735 = vsub.f32 %v727, %v731
        %v736 = vsub.f32 %v728, %v732
        %v737 = vmax.f32 %v733, 0.0
        %v738 = vmax.f32 %v734, 0.0
        %v739 = vmax.f32 %v735, 0.0
        %v740 = vmax.f32 %v736, 0.0
        %v741 = vmax.f32 %v635, %v652
        %v742 = vmax.f32 %v639, %v652
        %v743 = vmax.f32 %v643, %v652
        %v744 = vmax.f32 %v647, %v652
        %v745 = vmin.f32 %v659, %v676
        %v746 = vmin.f32 %v663, %v676
        %v747 = vmin.f32 %v667, %v676
        %v748 = vmin.f32 %v671, %v676
        %v749 = vsub.f32 %v741, %v745
        %v750 = vsub.f32 %v742, %v746
        %v751 = vsub.f32 %v743, %v747
        %v752 = vsub.f32 %v744, %v748
        %v753 = vmax.f32 %v749, 0.0
        %v754 = vmax.f32 %v750, 0.0
        %v755 = vmax.f32 %v751, 0.0
        %v756 = vmax.f32 %v752, 0.0
        %v757 = vmul.f32 %v737, %v753
        %v758 = vmul.f32 %v738, %v754
        %v759 = vmul.f32 %v739, %v755
        %v760 = vmul.f32 %v740, %v756
        %v761 = vmul.f32 %v689, %v757
        %v762 = vmul.f32 %v690, %v758
        %v763 = vmul.f32 %v691, %v759
        %v764 = vmul.f32 %v692, %v760
        %v765 = vsub.f32 %v757, %v721
        %v766 = vsub.f32 %v758, %v722
        %v767 = vsub.f32 %v759, %v723
        %v768 = vsub.f32 %v760, %v724
        %v769 = vmul.f32 %v765, %v721
        %v770 = vmul.f32 %v766, %v722
        %v771 = vmul.f32 %v767, %v723
        %v772 = vmul.f32 %v768, %v724
        %v773 = vsub.f32 %v761, %v769
        %v774 = vsub.f32 %v762, %v770
        %v775 = vsub.f32 %v763, %v771
        %v776 = vsub.f32 %v764, %v772
        %v777 = vmul.f32 %v721, %v757
        %v778 = vmul.f32 %v722, %v758
        %v779 = vmul.f32 %v723, %v759
        %v780 = vmul.f32 %v724, %v760
        %v781 = vmax.f32 %v777, 1e-12
        %v782 = vmax.f32 %v778, 1e-12
        %v783 = vmax.f32 %v779, 1e-12
        %v784 = vmax.f32 %v780, 1e-12
        %v785 = vrcp.pop %v781
        %v786 = vrcp.pop %v782
        %v787 = vrcp.pop %v783
        %v788 = vrcp.pop %v784
        %v789 = vmul.f32 %v773, %v785
        %v790 = vmul.f32 %v774, %v786
        %v791 = vmul.f32 %v775, %v787
        %v792 = vmul.f32 %v776, %v788
        %v793 = vsub.f32 %v555, %v789
        %v794 = vsub.f32 %v558, %v790
        %v795 = vsub.f32 %v563, %v791
        %v796 = vsub.f32 %v566, %v792
        %797 = vst [vmem:[%s247] sm:$0xff] %v793
        %798 = vst [vmem:[%s247 + $0x8] sm:$0xff] %v794
        %799 = vst [vmem:[%s247 + $0x10] sm:$0xff] %v795
        %800 = vst [vmem:[%s247 + $0x18] sm:$0xff] %v796
        %s801 = sand.u32 %s144, 1
        %s802 = scalar_lea.sflag [#allocation3], %s801
        %s803 = sand.u32 %s144, 1
        %s804 = smul.addr %s803, 32
        %s805 = scalar_lea.vmem [#allocation2], %s804
        // Predicated region
        $region37: #{tpu_custom_call.1} parent=35 // pred_check
          %p806 = pneg %p154
        $region38: #{tpu_custom_call.1} parent=35 // pred_check_branch
          %808 = sbr.rel (%p806) target = $region40
        $region39: #{tpu_custom_call.1} parent=35 // pred_region
          %s809 = smul.u32 4, %s22
          %s811 = ssub.s32 512, 512
          %812 = vsyncadd %s802, %s811
          %s813 = sadd.s32 %s23, %s809
          %s814 = smul.addr %s813, 128
          %s815 = scalar_lea.hbm %s4, %s814
          %s816 = sshll.u32 %s805, 4
          %s817 = int_to_ptr.vmem [resolvable:$true] %s816
          %822 = dma.vmem_to_hbm [thread:$0]  %s817, 512, %s815, %s802, 128, 128, 8
        $region40: #{tpu_custom_call.1} parent=35 // pred_fallthru
          _
      $region36: #{tpu_custom_call.1} parent=5 // pred_fallthru
        _
      %p823 = scmp.le.s32.totalorder 2, %s13
      // Predicated region
      $region41: #{tpu_custom_call.1} parent=5 // pred_check
        %p824 = pneg %p823
      $region42: #{tpu_custom_call.1} parent=5 // pred_check_branch
        %826 = sbr.rel (%p824) target = $region44
      $region43: #{tpu_custom_call.1} parent=5 // pred_region
        %s827 = ssub.s32 %s13, 2
        // Predicated region
        $region45: #{tpu_custom_call.1} parent=43 // pred_check
          %p828 = pneg %p160
        $region46: #{tpu_custom_call.1} parent=43 // pred_check_branch
          %830 = sbr.rel (%p828) target = $region48
        $region47: #{tpu_custom_call.1} parent=43 // pred_region
          %s831 = sand.u32 %s145, 1
          %s832 = scalar_lea.sflag [#allocation3], %s831
          %s833 = sand.u32 %s145, 1
          %s834 = smul.addr %s833, 32
          %s835 = scalar_lea.vmem [#allocation2], %s834
          %836 = dma.done %s832, 512
        $region48: #{tpu_custom_call.1} parent=43 // pred_fallthru
          _
      $region44: #{tpu_custom_call.1} parent=5 // pred_fallthru
        _
    $region6: #{tpu_custom_call.1} parent=1 // loop_footer
      %s17 = sadd.s32 1, %s13
    $region7: #{tpu_custom_call.1} parent=1 // loop_footer_branch
      %12 = sbr.rel target = $region3
    $region8: #{tpu_custom_call.1} parent=1 // loop_exit
      _
    %837 = vsyncpa [#allocation3], 1
    %s838 = scalar_lea.sflag [#allocation3], 1
    %839 = vsyncpa %s838, 1

</llo_original>
